<compile_context>
chip_gen: v5e
topology: v5e:2x2
jax: 0.10.0
libtpu: 0.0.40
codegen_flags: <defaults>
</compile_context>

<pallas_src>
import functools

import jax
import jax.numpy as jnp
from jax.experimental import pallas as pl
from jax.experimental.pallas import tpu as pltpu

_SUB = 8              # f32 sublane alignment
_LANE = 128           # lane alignment
_TK_CAP = 2048        # max K-block width (lanes) per grid step
_TK_VMEM_BUDGET = 8 * 1024 * 1024  # bytes for the double-buffered feature tiles


def _round_up(x, m):
    return (x + m - 1) // m * m


def _pick_tk(M_pad, K):
    """Largest lane-aligned K tile that keeps 2x (M_pad, tk) f32 within budget."""
    by_vmem = (_TK_VMEM_BUDGET // (2 * 4 * M_pad)) // _LANE * _LANE
    by_vmem = max(_LANE, by_vmem)
    return min(_round_up(K, _LANE), _TK_CAP, by_vmem)


def _prep_features(x):
    """Flatten NCHW -> (M, K) features, padding only if alignment requires it."""
    a, b, c, d = x.shape
    M, K = a * b, c * d
    f = x.reshape(M, K)
    M_pad = _round_up(M, _SUB)
    tk = _pick_tk(M_pad, K)
    K_pad = _round_up(K, tk)
    if (M_pad != M) or (K_pad != K):
        # Zero rows/cols contribute nothing to f @ f.T -> exact result.
        f = jnp.pad(f, ((0, M_pad - M), (0, K_pad - K)))
    return f, M, K, M_pad, K_pad, tk


def _gram_kernel(f_ref, g_ref, *, inv_norm):
    """Accumulate f @ f.T directly into the resident output block."""
    k = pl.program_id(0)

    @pl.when(k == 0)
    def _():
        g_ref[...] = jnp.zeros_like(g_ref)

    f = f_ref[...]  # (M_pad, tk)
    g_ref[...] += jax.lax.dot_general(
        f, f,
        dimension_numbers=(((1,), (1,)), ((), ())),  # f @ f.T on the MXU
        preferred_element_type=jnp.float32,
    )

    @pl.when(k == pl.num_programs(0) - 1)
    def _():
        g_ref[...] *= jnp.float32(inv_norm)


def _style_loss_kernel(f_ref, tgt_ref, loss_ref, acc_ref, *, inv_norm, inv_count):
    """Gram of f, then MSE against the (fixed) target Gram, fused in one pass."""
    k = pl.program_id(0)

    @pl.when(k == 0)
    def _():
        acc_ref[...] = jnp.zeros_like(acc_ref)

    f = f_ref[...]  # (M_pad, tk)
    acc_ref[...] += jax.lax.dot_general(
        f, f,
        dimension_numbers=(((1,), (1,)), ((), ())),  # f @ f.T on the MXU
        preferred_element_type=jnp.float32,
    )

    @pl.when(k == pl.num_programs(0) - 1)
    def _():
        g = acc_ref[...] * jnp.float32(inv_norm)      # normalized Gram
        d = g - tgt_ref[...]                           # padded entries are 0 on both sides
        loss_ref[0, 0] = jnp.sum(d * d) * jnp.float32(inv_count)  # mean over true M*M


def _gram_padded(x):
    """Padded Gram matrix (M_pad, M_pad) f32; padded rows/cols are exactly zero."""
    a, b, c, d = x.shape
    f, M, K, M_pad, K_pad, tk = _prep_features(x)
    inv_norm = 1.0 / float(a * b * c * d)

    g = pl.pallas_call(
        functools.partial(_gram_kernel, inv_norm=inv_norm),
        out_shape=jax.ShapeDtypeStruct((M_pad, M_pad), jnp.float32),
        grid_spec=pltpu.PrefetchScalarGridSpec(
            num_scalar_prefetch=0,
            grid=(K_pad // tk,),
            in_specs=[pl.BlockSpec((M_pad, tk), lambda k: (0, k))],
            out_specs=pl.BlockSpec((M_pad, M_pad), lambda k: (0, 0)),  # resident accumulator
        ),
        compiler_params=pltpu.CompilerParams(
            dimension_semantics=("arbitrary",),  # K reduction is sequential
        ),
        cost_estimate=pl.CostEstimate(
            flops=2 * M_pad * M_pad * K_pad,
            transcendentals=0,
            bytes_accessed=4 * (M_pad * K_pad + M_pad * M_pad),
        ),
    )(f)
    return g, M, M_pad


def gram_matrix(x):
    """G = features @ features.T / (a*b*c*d), mirroring StyleLoss.__grammatrix__."""
    g, M, _M_pad = _gram_padded(x)
    return g[:M, :M]


class StyleLoss:
    """Pallas mirror of the PyTorch StyleLoss module."""

    def __init__(self, target_feature):
        self._shape = tuple(target_feature.shape)
        # self.target = gram(target_feature).detach() — kept in padded layout so
        # forward() feeds it to the kernel with zero extra copies.
        self._target_padded, self._M, self._M_pad = _gram_padded(target_feature)
        self.target = self._target_padded[: self._M, : self._M]
        self.loss = None

    def forward(self, x):
        a, b, c, d = x.shape
        f, M, _K, M_pad, K_pad, tk = _prep_features(x)
        inv_norm = 1.0 / float(a * b * c * d)
        inv_count = 1.0 / float(M * M)

        loss = pl.pallas_call(
            functools.partial(_style_loss_kernel, inv_norm=inv_norm, inv_count=inv_count),
            out_shape=jax.ShapeDtypeStruct((1, 1), jnp.float32),
            grid_spec=pltpu.PrefetchScalarGridSpec(
                num_scalar_prefetch=0,
                grid=(K_pad // tk,),
                in_specs=[
                    pl.BlockSpec((M_pad, tk), lambda k: (0, k)),      # features
                    pl.BlockSpec((M_pad, M_pad), lambda k: (0, 0)),   # target Gram (resident)
                ],
                out_specs=pl.BlockSpec((1, 1), lambda k: (0, 0)),
                scratch_shapes=[pltpu.VMEM((M_pad, M_pad), jnp.float32)],
            ),
            compiler_params=pltpu.CompilerParams(
                dimension_semantics=("arbitrary",),  # K reduction is sequential
            ),
            cost_estimate=pl.CostEstimate(
                flops=2 * M_pad * M_pad * K_pad + 3 * M_pad * M_pad,
                transcendentals=0,
                bytes_accessed=4 * (M_pad * K_pad + M_pad * M_pad + 1),
            ),
        )(f, self._target_padded)

        # PyTorch stashes the scalar on self.loss and returns the input unchanged.
        self.loss = loss[0, 0]
        return x


if __name__ == "__main__":
    key = jax.random.PRNGKey(0)
    k_x, k_t = jax.random.split(key)

    # NCHW feature maps, small shapes consistent with the module's conv-feature input.
    x = jax.random.normal(k_x, (2, 4, 16, 16), dtype=jnp.float32)
    target_feature = jax.random.normal(k_t, (2, 4, 16, 16), dtype=jnp.float32)

    # __init__: capture the (detached) target Gram matrix once.
    sl = StyleLoss(target_feature)
    jax.block_until_ready(sl.target)

    # forward(input): returns input unchanged, stashes scalar loss on self.loss.
    out = sl.forward(x)
    out = jax.block_until_ready(out)
    loss = jax.block_until_ready(sl.loss)

    # Plain-JAX reference (high-precision matmul).
    def ref_gram(t):
        a, b, c, d = t.shape
        ft = t.reshape(a * b, c * d)
        g = jnp.dot(ft, ft.T, precision=jax.lax.Precision.HIGHEST)
        return g / (a * b * c * d)

    ref_loss = jnp.mean((ref_gram(x) - ref_gram(target_feature)) ** 2)
    # Tolerance allows for MXU f32-matmul decomposition differences vs. HIGHEST.
    assert jnp.allclose(loss, ref_loss, rtol=5e-2, atol=1e-7), (loss, ref_loss)
    # Standalone gram_matrix helper matches the reference too.
    assert jnp.allclose(gram_matrix(x), ref_gram(x), rtol=5e-2, atol=1e-6)
    # forward returns the input unchanged.
    assert jnp.array_equal(out, x)

    print("KERNEL_OK")
</pallas_src>

<mosaic_0001>
module attributes {stable_mosaic.version = 11 : i64} {
  func.func @_gram_kernel(%arg0: i32, %arg1: memref<8x256xf32, #tpu.memory_space<vmem>>, %arg2: memref<8x8xf32, #tpu.memory_space<vmem>>) attributes {dimension_semantics = [#tpu.dimension_semantics<arbitrary>], iteration_bounds = array<i64: 1>, scalar_prefetch = 0 : i64, scratch_operands = 0 : i64, tpu.core_type = #tpu.core_type<tc>, window_params = [{transform_indices = @transform_0, window_bounds = array<i64: 8, 256>}, {pipeline_mode = #tpu.pipeline_mode<synchronous>, transform_indices = @transform_1, window_bounds = array<i64: 8, 8>}]} {
    %c0_i32 = arith.constant 0 : i32
    %0 = arith.cmpi eq, %arg0, %c0_i32 : i32
    %1 = arith.extui %0 : i1 to i32
    %c0_i32_0 = arith.constant 0 : i32
    %2 = arith.cmpi ne, %1, %c0_i32_0 : i32
    scf.if %2 {
      %cst_8 = arith.constant 0.000000e+00 : f32
      %11 = vector.broadcast %cst_8 : f32 to vector<8x8xf32>
      %c0_9 = arith.constant 0 : index
      %c0_10 = arith.constant 0 : index
      %12 = vector.load %arg2[%c0_9, %c0_10] : memref<8x8xf32, #tpu.memory_space<vmem>>, vector<8x8xf32>
      tpu.vector_store %arg2[%c0_9, %c0_10], %11 {strides = array<i32>} : memref<8x8xf32, #tpu.memory_space<vmem>>, vector<8x8xf32>,
    } else {
    }
    %c0 = arith.constant 0 : index
    %c0_1 = arith.constant 0 : index
    %3 = vector.load %arg1[%c0, %c0_1] : memref<8x256xf32, #tpu.memory_space<vmem>>, vector<8x256xf32>
    %c0_2 = arith.constant 0 : index
    %c0_3 = arith.constant 0 : index
    %4 = vector.load %arg2[%c0_2, %c0_3] : memref<8x8xf32, #tpu.memory_space<vmem>>, vector<8x8xf32>
    %cst = arith.constant dense<0.000000e+00> : vector<8x8xf32>
    %5 = tpu.matmul %3, %3, %cst {dimension_numbers = #tpu.dot_dimension_numbers<[1], [1], [0], [0], [0, 0, 1, 0], [], []>} : vector<8x256xf32>, vector<8x256xf32>, vector<8x8xf32> -> vector<8x8xf32>
    %6 = arith.addf %4, %5 : vector<8x8xf32>
    %c0_4 = arith.constant 0 : index
    %c0_5 = arith.constant 0 : index
    %7 = vector.load %arg2[%c0_4, %c0_5] : memref<8x8xf32, #tpu.memory_space<vmem>>, vector<8x8xf32>
    tpu.vector_store %arg2[%c0_4, %c0_5], %6 {strides = array<i32>} : memref<8x8xf32, #tpu.memory_space<vmem>>, vector<8x8xf32>,
    %c0_i32_6 = arith.constant 0 : i32
    %8 = arith.cmpi eq, %arg0, %c0_i32_6 : i32
    %9 = arith.extui %8 : i1 to i32
    %c0_i32_7 = arith.constant 0 : i32
    %10 = arith.cmpi ne, %9, %c0_i32_7 : i32
    scf.if %10 {
      %c0_8 = arith.constant 0 : index
      %c0_9 = arith.constant 0 : index
      %11 = vector.load %arg2[%c0_8, %c0_9] : memref<8x8xf32, #tpu.memory_space<vmem>>, vector<8x8xf32>
      %cst_10 = arith.constant 4.8828125E-4 : f32
      %12 = vector.broadcast %cst_10 : f32 to vector<8x8xf32>
      %13 = arith.mulf %11, %12 : vector<8x8xf32>
      %c0_11 = arith.constant 0 : index
      %c0_12 = arith.constant 0 : index
      %14 = vector.load %arg2[%c0_11, %c0_12] : memref<8x8xf32, #tpu.memory_space<vmem>>, vector<8x8xf32>
      tpu.vector_store %arg2[%c0_11, %c0_12], %13 {strides = array<i32>} : memref<8x8xf32, #tpu.memory_space<vmem>>, vector<8x8xf32>,
    } else {
    }
    return
  }
  func.func @transform_0(%arg0: i32) -> (i32, i32) {
    %c0_i32 = arith.constant 0 : i32
    %c0_i32_0 = arith.constant 0 : i32
    return %c0_i32, %arg0 : i32, i32
  }
  func.func @transform_1(%arg0: i32) -> (i32, i32) {
    %c0_i32 = arith.constant 0 : i32
    %c0_i32_0 = arith.constant 0 : i32
    %c0_i32_1 = arith.constant 0 : i32
    return %c0_i32, %c0_i32_0 : i32, i32
  }
}

</mosaic_0001>

<llo_original>
// kernel: tpu_custom_call.1
$region0: #{tpu_custom_call.1}
  #allocation0 [shape = 'u32[]', space=smem, size = 0x4, offset = 0x4, fixed_abs, tag = 'smem constant byte address 0x4 - core index']
  #allocation1 [shape = 'u32[72,128]{1,0:T(1,128)}', space=vmem, size = 0x9000, scoped, tag = 'internal scratch']
  %s0 = inlined_call_operand.hbm [shape: f32[8,256], index: 0, kind: input, shape index: {}]
  %s1 = inlined_call_operand.hbm [shape: f32[8,8], index: 1, kind: output, shape index: {}]
  %s2 = sld [smem:[#allocation0]]
  $region26: #{tpu_custom_call.1} parent=0
    _
  %s4 = ssub.s32 1, %s2
  %s5 = scalar_select 0, %s4, %s2
  $region1: #{tpu_custom_call.1} parent=0
    #allocation2 [shape = 'u8[8192]{0}', space=vmem, size = 0x2000, scoped, tag = 'input window, operand 0, single buffered']
    #allocation3 [shape = 's32[1]{0}', space=sflag, size = 0x4, scoped, tag = 'scoped memory for tpu_custom_call.1']
    #allocation4 [shape = 's32[1]{0}', space=sflag, size = 0x4, scoped, tag = 'scoped memory for tpu_custom_call.1']
    #allocation5 [shape = 'u8[4096]{0}', space=vmem, size = 0x1000, scoped, tag = 'output window, operand 0, single buffered']
    %6 = vsyncpa [#allocation3], 0
    %7 = vsyncpa [#allocation4], 0
    // Predicated region
    $region2: #{tpu_custom_call.1} parent=1 // pred_check
      _
    $region3: #{tpu_custom_call.1} parent=1 // pred_check_branch
      %9 = sbr.rel (0) target = $region5
    $region4: #{tpu_custom_call.1} parent=1 // pred_region
      %11 = vsyncadd [#allocation3], 0
      %s13 = sshll.u32 %s0, 4
      %s14 = int_to_ptr.hbm [resolvable:$true] %s13
      %s15 = sshll.u32 [#allocation2], 4
      %s16 = int_to_ptr.vmem [resolvable:$true] %s15
      %18 = dma.hbm_to_vmem [thread:$0]  %s14, 256, %s16, [#allocation3]
    $region5: #{tpu_custom_call.1} parent=1 // pred_fallthru
      _
    // Predicated region
    $region6: #{tpu_custom_call.1} parent=1 // pred_check
      _
    $region7: #{tpu_custom_call.1} parent=1 // pred_check_branch
      %20 = sbr.rel (0) target = $region9
    $region8: #{tpu_custom_call.1} parent=1 // pred_region
      %22 = dma.done [#allocation3], 256
    $region9: #{tpu_custom_call.1} parent=1 // pred_fallthru
      _
    %p23 = scmp.eq.s32.totalorder 0, 0
    // Predicated region
    $region10: #{tpu_custom_call.1} parent=1 // pred_check
      %p24 = pneg %p23
    $region11: #{tpu_custom_call.1} parent=1 // pred_check_branch
      %26 = sbr.rel (%p24) target = $region13
    $region12: #{tpu_custom_call.1} parent=1 // pred_region
      %vm27 = vcmask 64512
      %28 = vst.msk [vmem:[#allocation5] sm:$0xff] %vm27, 0.0
    $region13: #{tpu_custom_call.1} parent=1 // pred_fallthru
      _
    %v29 = vld [vmem:[#allocation2] sm:$0xff]
    %v30 = vld [vmem:[#allocation2 + $0x8] sm:$0xff]
    %v31 = vld [vmem:[#allocation5] sm:$0xff]
    %32 = vmatpush.xpose.msra.mxu0 0.0
    %33 = vmatpush.xpose.msra.mxu0 0.0
    %34 = vmatpush.xpose.msra.mxu0 0.0
    %35 = vmatpush.xpose.msra.mxu0 0.0
    %36 = vmatpush.xpose.msra.mxu0 0.0
    %37 = vmatpush.xpose.msra.mxu0 0.0
    %38 = vmatpush.xpose.msra.mxu0 0.0
    %39 = vmatpush.xpose.msra.mxu0 0.0
    %40 = vmatpush.xpose.msra.mxu0 0.0
    %41 = vmatpush.xpose.msra.mxu0 0.0
    %42 = vmatpush.xpose.msra.mxu0 0.0
    %43 = vmatpush.xpose.msra.mxu0 0.0
    %44 = vmatpush.xpose.msra.mxu0 0.0
    %45 = vmatpush.xpose.msra.mxu0 0.0
    %46 = vmatpush.xpose.msra.mxu0 0.0
    %47 = vmatpush.xpose.msra.mxu0 %v29
    %48 = vmatmul.f32.gmra.mxu0 %v29
    %v49 = vpop.f32.mrf.mxu0
    %v50 = vadd.f32 0.0, %v49
    %51 = vdwg.mxu0
    %52 = vmatpush.xpose.msra.mxu0 0.0
    %53 = vmatpush.xpose.msra.mxu0 0.0
    %54 = vmatpush.xpose.msra.mxu0 0.0
    %55 = vmatpush.xpose.msra.mxu0 0.0
    %56 = vmatpush.xpose.msra.mxu0 0.0
    %57 = vmatpush.xpose.msra.mxu0 0.0
    %58 = vmatpush.xpose.msra.mxu0 0.0
    %59 = vmatpush.xpose.msra.mxu0 0.0
    %60 = vmatpush.xpose.msra.mxu0 0.0
    %61 = vmatpush.xpose.msra.mxu0 0.0
    %62 = vmatpush.xpose.msra.mxu0 0.0
    %63 = vmatpush.xpose.msra.mxu0 0.0
    %64 = vmatpush.xpose.msra.mxu0 0.0
    %65 = vmatpush.xpose.msra.mxu0 0.0
    %66 = vmatpush.xpose.msra.mxu0 0.0
    %67 = vmatpush.xpose.msra.mxu0 %v30
    %68 = vmatmul.f32.gmra.mxu0 %v30
    %v69 = vpop.f32.mrf.mxu0
    %v70 = vadd.f32 %v50, %v69
    %71 = vdwg.mxu0
    %v72 = vadd.f32 %v31, %v70
    %vm73 = vcmask 64512
    %74 = vst.msk [vmem:[#allocation5] sm:$0xff] %vm73, %v72
    // Predicated region
    $region14: #{tpu_custom_call.1} parent=1 // pred_check
      %p75 = pneg %p23
    $region15: #{tpu_custom_call.1} parent=1 // pred_check_branch
      %77 = sbr.rel (%p75) target = $region17
    $region16: #{tpu_custom_call.1} parent=1 // pred_region
      %v78 = vld [vmem:[#allocation5] sm:$0xff]
      %v79 = vmul.f32 %v78, 0.00048828125
      %80 = vst.msk [vmem:[#allocation5] sm:$0xff] %vm73, %v79
    $region17: #{tpu_custom_call.1} parent=1 // pred_fallthru
      _
    // Predicated region
    $region18: #{tpu_custom_call.1} parent=1 // pred_check
      _
    $region19: #{tpu_custom_call.1} parent=1 // pred_check_branch
      %82 = sbr.rel (0) target = $region21
    $region20: #{tpu_custom_call.1} parent=1 // pred_region
      %84 = vsyncadd [#allocation4], 0
      %s86 = sshll.u32 [#allocation5], 4
      %s87 = int_to_ptr.vmem [resolvable:$true] %s86
      %s88 = sshll.u32 %s1, 4
      %s89 = int_to_ptr.hbm [resolvable:$true] %s88
      %91 = dma.vmem_to_hbm [thread:$0]  %s87, 128, %s89, [#allocation4]
    $region21: #{tpu_custom_call.1} parent=1 // pred_fallthru
      _
    // Predicated region
    $region22: #{tpu_custom_call.1} parent=1 // pred_check
      _
    $region23: #{tpu_custom_call.1} parent=1 // pred_check_branch
      %93 = sbr.rel (0) target = $region25
    $region24: #{tpu_custom_call.1} parent=1 // pred_region
      %95 = dma.done [#allocation4], 128
    $region25: #{tpu_custom_call.1} parent=1 // pred_fallthru
      _
    %96 = vsyncpa [#allocation3], 1
    %97 = vsyncpa [#allocation4], 1

</llo_original>
